<compile_context>
chip_gen: v7x
topology: tpu7x:2x2x1
jax: 0.10.0
libtpu: 0.0.40
codegen_flags: <defaults>
</compile_context>

<pallas_src>
import functools

import jax
import jax.numpy as jnp
from jax.experimental import pallas as pl
from jax.experimental.pallas import tpu as pltpu

_LANE = 128
_SMALL_BYTES = 2 * 1024 * 1024  # below this the free XLA reshape wins outright


def _vmem_config():
    """(vmem_limit_bytes, per-tile byte budget), generation-aware."""
    limit, tile = 48 * 1024 * 1024, 8 * 1024 * 1024  # safe on v7x (64 MiB VMEM)
    try:
        cap = getattr(pltpu.get_tpu_info(), "vmem_capacity_bytes", None)
        if cap is not None and cap >= 96 * 1024 * 1024:  # v5e / v6e: 128 MiB
            limit, tile = 64 * 1024 * 1024, 12 * 1024 * 1024
    except Exception:
        pass
    return limit, tile


_VMEM_LIMIT, _TILE_BYTES = _vmem_config()


def _copy_kernel(x_ref, o_ref):
    # Pure lane-dense tile copy; the reshape already happened in the wrapper.
    o_ref[...] = x_ref[...]


def _sublane_multiple(dtype) -> int:
    # Packed sublane multiple: 8 for 32-bit, 16 for bf16, 32 for int8/fp8.
    return max(8, 32 // jnp.dtype(dtype).itemsize)


def _pick_slab_width(total: int):
    """Largest lane-dense width (multiple of 128) that divides `total`."""
    for lanes in (8192, 4096, 2048, 1024, 512, 256, 128):
        if total % lanes == 0:
            return lanes
    return None


def _row_tile(rows: int, row_bytes: int, sub: int) -> int:
    """Rows per tile: full extent if it fits, else a sublane-multiple chunk."""
    budget_rows = max(1, _TILE_BYTES // max(1, row_bytes))
    if rows <= budget_rows:
        return rows  # full extent -> always a legal block dim
    return max(sub, (budget_rows // sub) * sub)


def _launch_copy(x2d: jax.Array, tn: int, tf: int) -> jax.Array:
    rows, cols = x2d.shape
    grid = (pl.cdiv(rows, tn), pl.cdiv(cols, tf))
    if grid[1] == 1:
        grid = (grid[0],)
        in_spec = pl.BlockSpec((tn, tf), lambda i: (i, 0))
        out_spec = pl.BlockSpec((tn, tf), lambda i: (i, 0))
        sem = ("parallel",)
    else:
        in_spec = pl.BlockSpec((tn, tf), lambda i, j: (i, j))
        out_spec = pl.BlockSpec((tn, tf), lambda i, j: (i, j))
        sem = ("parallel", "parallel")
    return pl.pallas_call(
        _copy_kernel,
        out_shape=jax.ShapeDtypeStruct((rows, cols), x2d.dtype),
        grid=grid,
        in_specs=[in_spec],
        out_specs=out_spec,
        input_output_aliases={0: 0},  # no second HBM buffer for the output
        compiler_params=pltpu.CompilerParams(
            dimension_semantics=sem,
            vmem_limit_bytes=_VMEM_LIMIT,
        ),
    )(x2d)


@functools.partial(jax.jit, static_argnames=("force_pallas",))
def flatten(x: jax.Array, force_pallas: bool = False) -> jax.Array:
    """Pallas equivalent of torch Flatten: (N, ...) -> (N, prod(rest))."""
    n = x.shape[0]
    flat = 1
    for d in x.shape[1:]:
        flat *= d

    # Free metadata reshape == torch .view semantics for contiguous input.
    x2d = jnp.reshape(x, (n, flat))

    itemsize = jnp.dtype(x.dtype).itemsize
    total = n * flat
    total_bytes = total * itemsize

    # Default production path: the reshape is free, so only run the HBM-copy
    # kernel when forced (demo) or when the tensor is large enough to matter.
    if not force_pallas and total_bytes < _SMALL_BYTES:
        return x2d

    sub = _sublane_multiple(x.dtype)
    lanes = _pick_slab_width(total)

    if lanes is not None:
        # Lane-dense contiguous slab: unmasked stores, one linear DMA / tile.
        rows = total // lanes
        tn = _row_tile(rows, lanes * itemsize, sub)
        out = _launch_copy(jnp.reshape(x2d, (rows, lanes)), tn, lanes)
        return jnp.reshape(out, (n, flat))

    # Fallback: copy in the (N, flat) layout (total not a multiple of 128).
    if flat * itemsize <= _TILE_BYTES:
        tn = _row_tile(n, flat * itemsize, sub)
        return _launch_copy(x2d, tn, flat)  # full-row tiles, 1-D grid
    tf = max(_LANE, (_TILE_BYTES // (sub * itemsize)) // _LANE * _LANE)
    return _launch_copy(x2d, sub, tf)


if __name__ == "__main__":
    key = jax.random.PRNGKey(0)

    # Demo-sized NCHW input matching the classifier head in the spec.
    x_small = jax.random.normal(key, (2, 4, 16, 16), dtype=jnp.float32)
    y_small = flatten(x_small, force_pallas=True)  # exercise the kernel path
    jax.block_until_ready(y_small)
    ref_small = jnp.reshape(x_small, (x_small.shape[0], -1))
    assert y_small.shape == (2, 4 * 16 * 16), y_small.shape
    assert y_small.dtype == x_small.dtype
    assert bool(jnp.array_equal(y_small, ref_small))

    # Larger input: lane-dense slab path with wider (8192-lane) tiles.
    x_big = jax.random.normal(jax.random.PRNGKey(1), (16, 8, 32, 32),
                              dtype=jnp.float32)
    y_big = flatten(x_big, force_pallas=True)
    jax.block_until_ready(y_big)
    assert y_big.shape == (16, 8 * 32 * 32), y_big.shape
    assert bool(jnp.array_equal(y_big, jnp.reshape(x_big, (16, -1))))

    # bf16 exercises the dtype-aware (16-row) sublane rounding.
    x_bf16 = jax.random.normal(jax.random.PRNGKey(2), (16, 8, 32, 32),
                               dtype=jnp.bfloat16)
    y_bf16 = flatten(x_bf16, force_pallas=True)
    jax.block_until_ready(y_bf16)
    assert bool(jnp.array_equal(y_bf16, jnp.reshape(x_bf16, (16, -1))))

    # Awkward shape (total not a multiple of 128) exercises the (N, flat)
    # full-extent fallback layout.
    x_odd = jax.random.normal(jax.random.PRNGKey(3), (3, 5, 7, 9),
                              dtype=jnp.float32)
    y_odd = flatten(x_odd, force_pallas=True)
    jax.block_until_ready(y_odd)
    assert bool(jnp.array_equal(y_odd, jnp.reshape(x_odd, (3, -1))))

    # Default dispatch: small tensors skip the kernel (free reshape).
    y_fast = flatten(x_small)
    jax.block_until_ready(y_fast)
    assert bool(jnp.array_equal(y_fast, ref_small))

    print("KERNEL_OK")
</pallas_src>

<mosaic_0001>
module attributes {stable_mosaic.version = 11 : i64} {
  func.func @_copy_kernel(%arg0: i32, %arg1: memref<1x2048xf32, #tpu.memory_space<vmem>>, %arg2: memref<1x2048xf32, #tpu.memory_space<vmem>>) attributes {dimension_semantics = [#tpu.dimension_semantics<parallel>], iteration_bounds = array<i64: 1>, scalar_prefetch = 0 : i64, scratch_operands = 0 : i64, tpu.core_type = #tpu.core_type<tc>, window_params = [{transform_indices = @transform_0, window_bounds = array<i64: 1, 2048>}, {transform_indices = @transform_1, window_bounds = array<i64: 1, 2048>}]} {
    %c0 = arith.constant 0 : index
    %c0_0 = arith.constant 0 : index
    %0 = vector.load %arg1[%c0, %c0_0] : memref<1x2048xf32, #tpu.memory_space<vmem>>, vector<1x2048xf32>
    %c0_1 = arith.constant 0 : index
    %c0_2 = arith.constant 0 : index
    %1 = vector.load %arg2[%c0_1, %c0_2] : memref<1x2048xf32, #tpu.memory_space<vmem>>, vector<1x2048xf32>
    tpu.vector_store %arg2[%c0_1, %c0_2], %0 {strides = array<i32>} : memref<1x2048xf32, #tpu.memory_space<vmem>>, vector<1x2048xf32>,
    return
  }
  func.func @transform_0(%arg0: i32) -> (i32, i32) {
    %c0_i32 = arith.constant 0 : i32
    %c0_i32_0 = arith.constant 0 : i32
    return %arg0, %c0_i32 : i32, i32
  }
  func.func @transform_1(%arg0: i32) -> (i32, i32) {
    %c0_i32 = arith.constant 0 : i32
    %c0_i32_0 = arith.constant 0 : i32
    return %arg0, %c0_i32 : i32, i32
  }
}

</mosaic_0001>

<llo_original>
// kernel: flatten.1
$region0: #{flatten.1}
  #allocation0 [shape = 'u32[]', space=smem, size = 0x4, offset = 0x4, fixed_abs, tag = 'smem constant byte address 0x4 - core index']
  #allocation1 [shape = 'u32[144,128]{1,0:T(1,128)}', space=vmem, size = 0x12000, scoped, tag = 'internal scratch']
  %s0 = inlined_call_operand.vmem [shape: f32[1,2048], index: 0, kind: input, shape index: {}, may-alias: {0,1}]
  %s1 = inlined_call_operand.vmem [shape: f32[1,2048], index: 1, kind: output, shape index: {}, may-alias: {0,1}]
  %s2 = sld [smem:[#allocation0]]
  $region14: #{flatten.1} parent=0
    _
  %s4 = ssub.s32 1, %s2
  %s5 = scalar_select 0, %s4, %s2
  // Predicated region
  $region2: #{flatten.1} parent=0 // pred_check
    _
  $region3: #{flatten.1} parent=0 // pred_check_branch
    %7 = sbr.rel (0) target = $region5
  $region4: #{flatten.1} parent=0 // pred_region
    _
  $region5: #{flatten.1} parent=0 // pred_fallthru
    _
  %v8 = vld [vmem:[%s0] sm:$0xff]
  %v9 = vld [vmem:[%s0 + $0x8] sm:$0xff]
  %10 = vst [vmem:[%s1] sm:$0xff] %v8
  %11 = vst [vmem:[%s1 + $0x8] sm:$0xff] %v9
  // Predicated region
  $region6: #{flatten.1} parent=0 // pred_check
    _
  $region7: #{flatten.1} parent=0 // pred_check_branch
    %13 = sbr.rel (0) target = $region9
  $region8: #{flatten.1} parent=0 // pred_region
    _
  $region9: #{flatten.1} parent=0 // pred_fallthru
    _
  // Predicated region
  $region10: #{flatten.1} parent=0 // pred_check
    _
  $region11: #{flatten.1} parent=0 // pred_check_branch
    %15 = sbr.rel (0) target = $region13
  $region12: #{flatten.1} parent=0 // pred_region
    _
  $region13: #{flatten.1} parent=0 // pred_fallthru
    _

</llo_original>
